<compile_context>
chip_gen: v5e
topology: v5e:2x2
jax: 0.10.0
libtpu: 0.0.40
codegen_flags: <defaults>
</compile_context>

<pallas_src>
import math
from functools import partial

import jax
import jax.numpy as jnp
from jax.experimental import pallas as pl
from jax.experimental.pallas import tpu as pltpu


# ---------------------------------------------------------------------------
# Kernel: per (batch, HW-tile) step
#   y = W_mod[b] @ x[b, :, tile]  (+ noise)  -> +bias -> lrelu*gain -> clamp
# ---------------------------------------------------------------------------
def _mod_conv1x1_act_kernel(w_ref, x_ref, *rest, act_gain, alpha, clamp, has_noise):
    if has_noise:
        noise_ref, bias_ref, o_ref = rest
    else:
        bias_ref, o_ref = rest

    # (Cout, Cin) @ (Cin, T) -> (Cout, T); f32 accumulation on the MXU.
    y = jnp.dot(w_ref[...], x_ref[...], preferred_element_type=jnp.float32)
    if has_noise:
        y = y + noise_ref[...]              # (1, T) broadcast over Cout
    y = y + bias_ref[...]                   # (Cout, 1) broadcast over lanes
    y = jnp.where(y >= 0.0, y, alpha * y) * act_gain      # leaky relu * gain
    if clamp is not None:
        y = jnp.clip(y, -clamp, clamp)
    o_ref[...] = y.astype(o_ref.dtype)


def _pick_hw_tile(hw, cin, cout, dtype_bytes=4, vmem_budget_bytes=8 << 20):
    """Largest lane-dense HW tile whose double-buffered x/out blocks fit the budget."""
    per_col = (cin + cout) * dtype_bytes * 2      # x block + out block, double buffered
    max_t = max(128, (vmem_budget_bytes // per_col) // 128 * 128)
    if hw <= max_t:
        return hw
    t = max_t
    while t >= 128:
        if hw % t == 0:
            return t
        t -= 128
    return max_t   # non-dividing fallback: cdiv grid, tail block masked on writeback


def synthesis_layer_forward(x_nchw, w_latent, params, *, noise_mode='const',
                            gain=1.0, conv_clamp=None, lrelu_alpha=0.2):
    """SynthesisLayer.forward for kernel_size=1, up=1, mode='2d', lrelu.

    x_nchw:   [B, Cin, H, W] float32
    w_latent: [B, w_dim]     float32
    params:   'affine_w' [Cin, w_dim], 'affine_b' [Cin],
              'weight' [Cout, Cin] (kernel_size=1 squeezed), 'bias' [Cout],
              'noise_const' [H, W], 'noise_strength' scalar
    returns:  [B, Cout, H, W] float32
    """
    B, Cin, H, W = x_nchw.shape
    HW = H * W
    w_dim = w_latent.shape[1]
    Cout = params["weight"].shape[0]

    # ---- styles = affine(w): tiny (B,w_dim)@(w_dim,Cin) -> plain-JAX prologue
    affine_gain = 1.0 / math.sqrt(w_dim)       # FullyConnectedLayer.weight_gain
    styles = w_latent @ (params["affine_w"].T * affine_gain) + params["affine_b"][None, :]

    # ---- fold modulation + demodulation into a per-batch (Cout, Cin) weight
    w_mod = params["weight"][None, :, :] * styles[:, None, :]        # [B, Cout, Cin]
    dcoef = jax.lax.rsqrt(jnp.sum(w_mod * w_mod, axis=2) + 1e-8)     # [B, Cout]
    w_mod = (w_mod * dcoef[:, :, None]).astype(jnp.float32)

    # ---- channels-first, spatially flattened (free reshape, HW lane-dense)
    x_flat = x_nchw.reshape(B, Cin, HW)
    bias2d = params["bias"].reshape(Cout, 1).astype(jnp.float32)

    has_noise = noise_mode == 'const'
    if noise_mode == 'const':
        noise_flat = (params["noise_const"] * params["noise_strength"]).reshape(1, 1, HW)
        noise_flat = jnp.broadcast_to(noise_flat, (B, 1, HW)).astype(jnp.float32)
    elif noise_mode == 'none':
        noise_flat = None
    else:
        # TODO(synk): noise_mode='random' / input_noise needs an external noise tensor or pltpu PRNG.
        raise NotImplementedError(f"noise_mode={noise_mode!r} not supported")

    act_gain = math.sqrt(2.0) * gain                       # lrelu def_gain * gain
    act_clamp = conv_clamp * gain if conv_clamp is not None else None

    T = _pick_hw_tile(HW, Cin, Cout)
    grid = (B, pl.cdiv(HW, T))

    in_specs = [
        pl.BlockSpec((pl.Squeezed(), Cout, Cin), lambda b, t: (b, 0, 0)),   # w_mod[b]
        pl.BlockSpec((pl.Squeezed(), Cin, T), lambda b, t: (b, 0, t)),      # x[b,:,tile]
    ]
    inputs = [w_mod, x_flat]
    if has_noise:
        in_specs.append(pl.BlockSpec((pl.Squeezed(), 1, T), lambda b, t: (b, 0, t)))
        inputs.append(noise_flat)
    in_specs.append(pl.BlockSpec((Cout, 1), lambda b, t: (0, 0)))           # bias
    inputs.append(bias2d)

    out_flat = pl.pallas_call(
        partial(_mod_conv1x1_act_kernel, act_gain=act_gain, alpha=lrelu_alpha,
                clamp=act_clamp, has_noise=has_noise),
        out_shape=jax.ShapeDtypeStruct((B, Cout, HW), jnp.float32),
        grid=grid,
        in_specs=in_specs,
        out_specs=pl.BlockSpec((pl.Squeezed(), Cout, T), lambda b, t: (b, 0, t)),
        compiler_params=pltpu.CompilerParams(
            dimension_semantics=("parallel", "parallel")),
    )(*inputs)

    # free reshape back to NCHW
    return out_flat.reshape(B, Cout, H, W)


# ---------------------------------------------------------------------------
# Plain-JAX reference mirroring the PyTorch forward (same config).
# ---------------------------------------------------------------------------
def _reference(x_nchw, w_latent, params, *, noise_mode='const', gain=1.0,
               conv_clamp=None, lrelu_alpha=0.2):
    B, Cin, H, W = x_nchw.shape
    w_dim = w_latent.shape[1]
    styles = w_latent @ (params["affine_w"].T / math.sqrt(w_dim)) + params["affine_b"][None, :]
    w_mod = params["weight"][None, :, :] * styles[:, None, :]
    dcoef = jax.lax.rsqrt(jnp.sum(w_mod * w_mod, axis=2) + 1e-8)
    w_mod = w_mod * dcoef[:, :, None]
    y = jnp.einsum("boi,bihw->bohw", w_mod, x_nchw)
    if noise_mode == 'const':
        y = y + (params["noise_const"] * params["noise_strength"])[None, None, :, :]
    y = y + params["bias"][None, :, None, None]
    y = jnp.where(y >= 0, y, lrelu_alpha * y) * (math.sqrt(2.0) * gain)
    if conv_clamp is not None:
        c = conv_clamp * gain
        y = jnp.clip(y, -c, c)
    return y


if __name__ == "__main__":
    # SynthesisLayer(in_channels=8, out_channels=8, w_dim=8, resolution=16,
    #                kernel_size=1, activation='lrelu', mode='2d')
    B, Cin, Cout, w_dim, H, W = 2, 8, 8, 8, 16, 16
    conv_clamp = 256.0

    key = jax.random.PRNGKey(0)
    k_x, k_w, k_aw, k_cw, k_b, k_n = jax.random.split(key, 6)

    x = jax.random.normal(k_x, (B, Cin, H, W), jnp.float32)
    w_latent = jax.random.normal(k_w, (B, w_dim), jnp.float32)

    params = {
        # FullyConnectedLayer(w_dim, in_channels, bias_init=1)
        "affine_w": jax.random.normal(k_aw, (Cin, w_dim), jnp.float32),
        "affine_b": jnp.ones((Cin,), jnp.float32),
        # SynthesisLayer.weight randn([out, in, 1, 1]) squeezed; bias param
        "weight": jax.random.normal(k_cw, (Cout, Cin), jnp.float32),
        "bias": 0.1 * jax.random.normal(k_b, (Cout,), jnp.float32),
        # noise buffers (noise_mode='const' path)
        "noise_const": jax.random.normal(k_n, (H, W), jnp.float32),
        "noise_strength": jnp.float32(0.1),
    }

    out = synthesis_layer_forward(x, w_latent, params, noise_mode='const',
                                  gain=1.0, conv_clamp=conv_clamp)
    out = jax.block_until_ready(out)

    ref = _reference(x, w_latent, params, noise_mode='const', gain=1.0,
                     conv_clamp=conv_clamp)
    assert out.shape == (B, Cout, H, W)
    assert jnp.allclose(out, ref, atol=1e-3, rtol=1e-3), float(jnp.max(jnp.abs(out - ref)))

    print("KERNEL_OK")
</pallas_src>

<mosaic_0001>
module attributes {stable_mosaic.version = 11 : i64} {
  func.func @_mod_conv1x1_act_kernel(%arg0: i32, %arg1: i32, %arg2: memref<1x8x8xf32, #tpu.memory_space<vmem>>, %arg3: memref<1x8x256xf32, #tpu.memory_space<vmem>>, %arg4: memref<1x1x256xf32, #tpu.memory_space<vmem>>, %arg5: memref<8x1xf32, #tpu.memory_space<vmem>>, %arg6: memref<1x8x256xf32, #tpu.memory_space<vmem>>) attributes {dimension_semantics = [#tpu.dimension_semantics<parallel>, #tpu.dimension_semantics<parallel>], iteration_bounds = array<i64: 2, 1>, scalar_prefetch = 0 : i64, scratch_operands = 0 : i64, tpu.core_type = #tpu.core_type<tc>, window_params = [{transform_indices = @transform_0, window_bounds = array<i64: 1, 8, 8>}, {transform_indices = @transform_1, window_bounds = array<i64: 1, 8, 256>}, {transform_indices = @transform_2, window_bounds = array<i64: 1, 1, 256>}, {pipeline_mode = #tpu.pipeline_mode<synchronous>, transform_indices = @transform_3, window_bounds = array<i64: 8, 1>}, {transform_indices = @transform_4, window_bounds = array<i64: 1, 8, 256>}]} {
    %c0 = arith.constant 0 : index
    %c0_0 = arith.constant 0 : index
    %c0_1 = arith.constant 0 : index
    %0 = vector.load %arg2[%c0, %c0_0, %c0_1] : memref<1x8x8xf32, #tpu.memory_space<vmem>>, vector<1x8x8xf32>
    %1 = vector.shape_cast %0 : vector<1x8x8xf32> to vector<8x8xf32>
    %c0_2 = arith.constant 0 : index
    %c0_3 = arith.constant 0 : index
    %c0_4 = arith.constant 0 : index
    %2 = vector.load %arg3[%c0_2, %c0_3, %c0_4] : memref<1x8x256xf32, #tpu.memory_space<vmem>>, vector<1x8x256xf32>
    %3 = vector.shape_cast %2 : vector<1x8x256xf32> to vector<8x256xf32>
    %cst = arith.constant dense<0.000000e+00> : vector<8x256xf32>
    %4 = tpu.matmul %1, %3, %cst {dimension_numbers = #tpu.dot_dimension_numbers<[1], [0], [0], [1], [0, 0, 1, 1], [], []>} : vector<8x8xf32>, vector<8x256xf32>, vector<8x256xf32> -> vector<8x256xf32>
    %c0_5 = arith.constant 0 : index
    %c0_6 = arith.constant 0 : index
    %c0_7 = arith.constant 0 : index
    %5 = vector.load %arg4[%c0_5, %c0_6, %c0_7] : memref<1x1x256xf32, #tpu.memory_space<vmem>>, vector<1x1x256xf32>
    %6 = vector.shape_cast %5 : vector<1x1x256xf32> to vector<1x256xf32>
    %7 = vector.broadcast %6 : vector<1x256xf32> to vector<8x256xf32>
    %8 = arith.addf %4, %7 : vector<8x256xf32>
    %c0_8 = arith.constant 0 : index
    %c0_9 = arith.constant 0 : index
    %9 = vector.load %arg5[%c0_8, %c0_9] : memref<8x1xf32, #tpu.memory_space<vmem>>, vector<8x1xf32>
    %10 = vector.broadcast %9 : vector<8x1xf32> to vector<8x256xf32>
    %11 = arith.addf %8, %10 : vector<8x256xf32>
    %cst_10 = arith.constant 0.000000e+00 : f32
    %12 = vector.broadcast %cst_10 : f32 to vector<8x256xf32>
    %13 = arith.cmpf oge, %11, %12 : vector<8x256xf32>
    %cst_11 = arith.constant 2.000000e-01 : f32
    %14 = vector.broadcast %cst_11 : f32 to vector<8x256xf32>
    %15 = arith.mulf %14, %11 : vector<8x256xf32>
    %16 = arith.select %13, %11, %15 : vector<8x256xi1>, vector<8x256xf32>
    %cst_12 = arith.constant 1.41421354 : f32
    %17 = vector.broadcast %cst_12 : f32 to vector<8x256xf32>
    %18 = arith.mulf %16, %17 : vector<8x256xf32>
    %cst_13 = arith.constant -2.560000e+02 : f32
    %cst_14 = arith.constant 2.560000e+02 : f32
    %19 = vector.broadcast %cst_13 : f32 to vector<8x256xf32>
    %20 = arith.maximumf %19, %18 : vector<8x256xf32>
    %21 = vector.broadcast %cst_14 : f32 to vector<8x256xf32>
    %22 = arith.minimumf %21, %20 : vector<8x256xf32>
    %c0_15 = arith.constant 0 : index
    %c0_16 = arith.constant 0 : index
    %c0_17 = arith.constant 0 : index
    %23 = vector.load %arg6[%c0_15, %c0_16, %c0_17] : memref<1x8x256xf32, #tpu.memory_space<vmem>>, vector<1x8x256xf32>
    %24 = vector.shape_cast %23 : vector<1x8x256xf32> to vector<8x256xf32>
    %25 = vector.shape_cast %22 : vector<8x256xf32> to vector<1x8x256xf32>
    tpu.vector_store %arg6[%c0_15, %c0_16, %c0_17], %25 {strides = array<i32>} : memref<1x8x256xf32, #tpu.memory_space<vmem>>, vector<1x8x256xf32>,
    return
  }
  func.func @transform_0(%arg0: i32, %arg1: i32) -> (i32, i32, i32) {
    %c0_i32 = arith.constant 0 : i32
    %c0_i32_0 = arith.constant 0 : i32
    %c0_i32_1 = arith.constant 0 : i32
    return %arg0, %c0_i32, %c0_i32_0 : i32, i32, i32
  }
  func.func @transform_1(%arg0: i32, %arg1: i32) -> (i32, i32, i32) {
    %c0_i32 = arith.constant 0 : i32
    %c0_i32_0 = arith.constant 0 : i32
    return %arg0, %c0_i32, %arg1 : i32, i32, i32
  }
  func.func @transform_2(%arg0: i32, %arg1: i32) -> (i32, i32, i32) {
    %c0_i32 = arith.constant 0 : i32
    %c0_i32_0 = arith.constant 0 : i32
    return %arg0, %c0_i32, %arg1 : i32, i32, i32
  }
  func.func @transform_3(%arg0: i32, %arg1: i32) -> (i32, i32) {
    %c0_i32 = arith.constant 0 : i32
    %c0_i32_0 = arith.constant 0 : i32
    %c0_i32_1 = arith.constant 0 : i32
    return %c0_i32, %c0_i32_0 : i32, i32
  }
  func.func @transform_4(%arg0: i32, %arg1: i32) -> (i32, i32, i32) {
    %c0_i32 = arith.constant 0 : i32
    %c0_i32_0 = arith.constant 0 : i32
    return %arg0, %c0_i32, %arg1 : i32, i32, i32
  }
}

</mosaic_0001>

<llo_original>
// kernel: tpu_custom_call.1
$region0: #{tpu_custom_call.1}
  #allocation0 [shape = 'u32[]', space=smem, size = 0x4, offset = 0x4, fixed_abs, tag = 'smem constant byte address 0x4 - core index']
  #allocation1 [shape = 'u32[72,128]{1,0:T(1,128)}', space=vmem, size = 0x9000, scoped, tag = 'internal scratch']
  %s0 = inlined_call_operand.hbm [shape: f32[2,8,8], index: 0, kind: input, shape index: {}]
  %s1 = inlined_call_operand.hbm [shape: f32[2,8,256], index: 1, kind: input, shape index: {}]
  %s2 = inlined_call_operand.vmem [shape: f32[2,1,256], index: 2, kind: input, shape index: {}]
  %s3 = inlined_call_operand.vmem [shape: f32[8,1], index: 3, kind: input, shape index: {}]
  %s4 = inlined_call_operand.hbm [shape: f32[2,8,256], index: 4, kind: output, shape index: {}]
  %s5 = sld [smem:[#allocation0]]
  $region57: #{tpu_custom_call.1} parent=0
    _
  %s7 = ssub.s32 1, %s5
  %s8 = scalar_select 0, %s7, %s5
  $region1: #{tpu_custom_call.1} parent=0
    #allocation2 [shape = 'u8[8192]{0}', space=vmem, size = 0x2000, scoped, tag = 'input window, operand 0']
    #allocation3 [shape = 's32[2]{0}', space=sflag, size = 0x8, scoped, tag = 'scoped memory for tpu_custom_call.1']
    #allocation4 [shape = 's32[2]{0}', space=sflag, size = 0x8, scoped, tag = 'scoped memory for tpu_custom_call.1']
    #allocation5 [shape = 'u8[16384]{0}', space=vmem, size = 0x4000, scoped, tag = 'input window, operand 1']
    #allocation6 [shape = 's32[2]{0}', space=sflag, size = 0x8, scoped, tag = 'scoped memory for tpu_custom_call.1']
    #allocation7 [shape = 'u8[16384]{0}', space=vmem, size = 0x4000, scoped, tag = 'output window, operand 0']
    %9 = vsyncpa [#allocation3], 0
    %s10 = scalar_lea.sflag [#allocation3], 1
    %11 = vsyncpa %s10, 0
    %12 = vsyncpa [#allocation6], 0
    %s13 = scalar_lea.sflag [#allocation6], 1
    %14 = vsyncpa %s13, 0
    %15 = vsyncpa [#allocation4], 0
    %s16 = scalar_lea.sflag [#allocation4], 1
    %17 = vsyncpa %s16, 0
    loop: start=0, step=1, limit=4
    $region2: #{tpu_custom_call.1} parent=1 // loop_pre_header
      _
    $region3: #{tpu_custom_call.1} parent=1 // loop_header
      %s19 = sphi 0, %s23
      %p20 = scmp.ge.s32.totalorder %s19, 4
      %s26 = sphi 0, %s38
      %s27 = sphi 0, %s34
      %s28 = sphi 0, %s26
      %s29 = sphi 0, %s27
      %s30 = sphi 0, %s28
      %s31 = sphi 0, %s29
      %s41 = sphi 0, %s43
      %s44 = sphi 0, %s41
      %s45 = sphi 0, %s44
      %s61 = sphi 0, %s45
      %s69 = sphi 0, %s71
      %s72 = sphi 0, %s69
      %s73 = sphi 0, %s72
      %s89 = sphi 0, %s73
      %s97 = sphi 0, %s99
      %s100 = sphi 0, %s97
      %s101 = sphi 0, %s100
      %s117 = sphi 0, %s101
      %s121 = sphi 0, %s121
      %s123 = sphi 0, %s121
      %s124 = sphi 0, %s123
      %s138 = sphi 0, %s124
      %s146 = sphi 0, %s148
      %s149 = sphi 0, %s146
      %s150 = sphi 0, %s149
      %s166 = sphi 0, %s150
    $region4: #{tpu_custom_call.1} parent=1 // loop_header_branch
      %22 = sbr.rel (%p20) target = $region8
    $region5: #{tpu_custom_call.1} parent=1 // loop_body
      %s24 = ssub.s32 %s19, 1
      %s25 = ssub.s32 %s19, 2
      %s32 = sadd.s32 1, %s27
      %p33 = scmp.ge.s32.totalorder %s32, 1
      %s34 = scalar_select %p33, 0, %s32
      %s35 = sadd.s32 1, %s26
      %s36 = scalar_select %p33, %s35, %s26
      %p37 = scmp.ge.s32.totalorder %s36, 2
      %s38 = scalar_select %p37, 0, %s36
      %s39 = ssub.s32 %s26, %s38
      %p40 = scmp.eq.s32.totalorder %s39, 0
      %s42 = sadd.s32 %s41, 1
      %s43 = scalar_select %p40, %s41, %s42
      %p46 = pneg %p40
      %p47 = scmp.eq.s32.totalorder %s19, 1
      %p48 = por %p46, %p47
      %p49 = scmp.ne.s32.totalorder %s41, %s44
      %p50 = scmp.eq.s32.totalorder %s19, 0
      %p51 = por %p49, %p50
      %p52 = scmp.ne.s32.totalorder %s41, %s44
      %p53 = scmp.eq.s32.totalorder %s24, 1
      %p54 = por %p52, %p53
      %p55 = scmp.ne.s32.totalorder %s44, %s45
      %p56 = scmp.eq.s32.totalorder %s24, 0
      %p57 = por %p55, %p56
      %p58 = scmp.ne.s32.totalorder %s44, %s45
      %p59 = scmp.eq.s32.totalorder %s25, 1
      %p60 = por %p58, %p59
      %p62 = scmp.ne.s32.totalorder %s45, %s61
      %p63 = scmp.eq.s32.totalorder %s25, 0
      %p64 = por %p62, %p63
      %s65 = ssub.s32 %s26, %s38
      %s66 = ssub.s32 %s27, %s34
      %s67 = sor.u32 %s65, %s66
      %p68 = scmp.eq.s32.totalorder %s67, 0
      %s70 = sadd.s32 %s69, 1
      %s71 = scalar_select %p68, %s69, %s70
      %p74 = pneg %p68
      %p75 = scmp.eq.s32.totalorder %s19, 1
      %p76 = por %p74, %p75
      %p77 = scmp.ne.s32.totalorder %s69, %s72
      %p78 = scmp.eq.s32.totalorder %s19, 0
      %p79 = por %p77, %p78
      %p80 = scmp.ne.s32.totalorder %s69, %s72
      %p81 = scmp.eq.s32.totalorder %s24, 1
      %p82 = por %p80, %p81
      %p83 = scmp.ne.s32.totalorder %s72, %s73
      %p84 = scmp.eq.s32.totalorder %s24, 0
      %p85 = por %p83, %p84
      %p86 = scmp.ne.s32.totalorder %s72, %s73
      %p87 = scmp.eq.s32.totalorder %s25, 1
      %p88 = por %p86, %p87
      %p90 = scmp.ne.s32.totalorder %s73, %s89
      %p91 = scmp.eq.s32.totalorder %s25, 0
      %p92 = por %p90, %p91
      %s93 = ssub.s32 %s26, %s38
      %s94 = ssub.s32 %s27, %s34
      %s95 = sor.u32 %s93, %s94
      %p96 = scmp.eq.s32.totalorder %s95, 0
      %s98 = sadd.s32 %s97, 1
      %s99 = scalar_select %p96, %s97, %s98
      %p102 = pneg %p96
      %p103 = scmp.eq.s32.totalorder %s19, 1
      %p104 = por %p102, %p103
      %p105 = scmp.ne.s32.totalorder %s97, %s100
      %p106 = scmp.eq.s32.totalorder %s19, 0
      %p107 = por %p105, %p106
      %p108 = scmp.ne.s32.totalorder %s97, %s100
      %p109 = scmp.eq.s32.totalorder %s24, 1
      %p110 = por %p108, %p109
      %p111 = scmp.ne.s32.totalorder %s100, %s101
      %p112 = scmp.eq.s32.totalorder %s24, 0
      %p113 = por %p111, %p112
      %p114 = scmp.ne.s32.totalorder %s100, %s101
      %p115 = scmp.eq.s32.totalorder %s25, 1
      %p116 = por %p114, %p115
      %p118 = scmp.ne.s32.totalorder %s101, %s117
      %p119 = scmp.eq.s32.totalorder %s25, 0
      %p120 = por %p118, %p119
      %s122 = sadd.s32 %s121, 1
      %p125 = scmp.eq.s32.totalorder %s19, 1
      %p126 = scmp.ne.s32.totalorder %s121, %s123
      %p127 = scmp.eq.s32.totalorder %s19, 0
      %p128 = por %p126, %p127
      %p129 = scmp.ne.s32.totalorder %s121, %s123
      %p130 = scmp.eq.s32.totalorder %s24, 1
      %p131 = por %p129, %p130
      %p132 = scmp.ne.s32.totalorder %s123, %s124
      %p133 = scmp.eq.s32.totalorder %s24, 0
      %p134 = por %p132, %p133
      %p135 = scmp.ne.s32.totalorder %s123, %s124
      %p136 = scmp.eq.s32.totalorder %s25, 1
      %p137 = por %p135, %p136
      %p139 = scmp.ne.s32.totalorder %s124, %s138
      %p140 = scmp.eq.s32.totalorder %s25, 0
      %p141 = por %p139, %p140
      %s142 = ssub.s32 %s26, %s38
      %s143 = ssub.s32 %s27, %s34
      %s144 = sor.u32 %s142, %s143
      %p145 = scmp.eq.s32.totalorder %s144, 0
      %s147 = sadd.s32 %s146, 1
      %s148 = scalar_select %p145, %s146, %s147
      %p151 = pneg %p145
      %p152 = scmp.eq.s32.totalorder %s19, 1
      %p153 = por %p151, %p152
      %p154 = scmp.ne.s32.totalorder %s146, %s149
      %p155 = scmp.eq.s32.totalorder %s19, 0
      %p156 = por %p154, %p155
      %p157 = scmp.ne.s32.totalorder %s146, %s149
      %p158 = scmp.eq.s32.totalorder %s24, 1
      %p159 = por %p157, %p158
      %p160 = scmp.ne.s32.totalorder %s149, %s150
      %p161 = scmp.eq.s32.totalorder %s24, 0
      %p162 = por %p160, %p161
      %p163 = scmp.ne.s32.totalorder %s149, %s150
      %p164 = scmp.eq.s32.totalorder %s25, 1
      %p165 = por %p163, %p164
      %p167 = scmp.ne.s32.totalorder %s150, %s166
      %p168 = scmp.eq.s32.totalorder %s25, 0
      %p169 = por %p167, %p168
      %p170 = scmp.le.s32.totalorder 1, %s19
      %p171 = scmp.lt.s32.totalorder %s19, 3
      %p172 = pnand %p170, %p171
      %p173 = pneg %p172
      // Predicated region
      $region9: #{tpu_custom_call.1} parent=5 // pred_check
        _
      $region10: #{tpu_custom_call.1} parent=5 // pred_check_branch
        %175 = sbr.rel (%p172) target = $region12
      $region11: #{tpu_custom_call.1} parent=5 // pred_region
        %s176 = ssub.s32 %s19, 1
        // Predicated region
        $region13: #{tpu_custom_call.1} parent=11 // pred_check
          %p177 = pneg %p134
        $region14: #{tpu_custom_call.1} parent=11 // pred_check_branch
          %179 = sbr.rel (%p177) target = $region16
        $region15: #{tpu_custom_call.1} parent=11 // pred_region
          _
        $region16: #{tpu_custom_call.1} parent=11 // pred_fallthru
          _
      $region12: #{tpu_custom_call.1} parent=5 // pred_fallthru
        _
      %p180 = scmp.lt.s32.totalorder %s19, 2
      // Predicated region
      $region17: #{tpu_custom_call.1} parent=5 // pred_check
        %p181 = pneg %p180
      $region18: #{tpu_custom_call.1} parent=5 // pred_check_branch
        %183 = sbr.rel (%p181) target = $region20
      $region19: #{tpu_custom_call.1} parent=5 // pred_region
        // Predicated region
        $region21: #{tpu_custom_call.1} parent=19 // pred_check
          %p184 = pneg %p51
        $region22: #{tpu_custom_call.1} parent=19 // pred_check_branch
          %186 = sbr.rel (%p184) target = $region24
        $region23: #{tpu_custom_call.1} parent=19 // pred_region
          %s187 = sand.u32 %s41, 1
          %s188 = scalar_lea.sflag [#allocation3], %s187
          %s189 = sand.u32 %s41, 1
          %s190 = smul.addr %s189, 8
          %s191 = scalar_lea.vmem [#allocation2], %s190
          %193 = vsyncadd %s188, 0
          %s194 = smul.addr %s26, 8
          %s195 = scalar_lea.hbm %s0, %s194
          %s197 = sshll.u32 %s195, 4
          %s198 = int_to_ptr.hbm [resolvable:$true] %s197
          %s199 = sshll.u32 %s191, 4
          %s200 = int_to_ptr.vmem [resolvable:$true] %s199
          %202 = dma.hbm_to_vmem [thread:$0]  %s198, 128, %s200, %s188
        $region24: #{tpu_custom_call.1} parent=19 // pred_fallthru
          _
        // Predicated region
        $region25: #{tpu_custom_call.1} parent=19 // pred_check
          %p203 = pneg %p79
        $region26: #{tpu_custom_call.1} parent=19 // pred_check_branch
          %205 = sbr.rel (%p203) target = $region28
        $region27: #{tpu_custom_call.1} parent=19 // pred_region
          %s206 = sand.u32 %s69, 1
          %s207 = scalar_lea.sflag [#allocation6], %s206
          %s208 = sand.u32 %s69, 1
          %s209 = smul.addr %s208, 16
          %s210 = scalar_lea.vmem [#allocation5], %s209
          %s211 = smul.u32 2, %s27
          %213 = vsyncadd %s207, 0
          %s214 = smul.addr %s26, 2
          %s215 = sadd.s32 %s211, %s214
          %s216 = smul.addr %s215, 8
          %s217 = scalar_lea.hbm %s1, %s216
          %s219 = sshll.u32 %s217, 4
          %s220 = int_to_ptr.hbm [resolvable:$true] %s219
          %s221 = sshll.u32 %s210, 4
          %s222 = int_to_ptr.vmem [resolvable:$true] %s221
          %224 = dma.hbm_to_vmem [thread:$0]  %s220, 256, %s222, %s207
        $region28: #{tpu_custom_call.1} parent=19 // pred_fallthru
          _
        // Predicated region
        $region29: #{tpu_custom_call.1} parent=19 // pred_check
          %p225 = pneg %p107
        $region30: #{tpu_custom_call.1} parent=19 // pred_check_branch
          %227 = sbr.rel (%p225) target = $region32
        $region31: #{tpu_custom_call.1} parent=19 // pred_region
          %s228 = smul.u32 2, %s27
          %p229 = scmp.lt.s32.totalorder %s26, 1
          %s230 = scalar_select %p229, %s26, 1
          %p231 = scmp.lt.s32.totalorder %s228, 1
          %s232 = scalar_select %p231, %s228, 1
          %s233 = smul.addr %s230, 2
          %s234 = sadd.s32 %s232, %s233
          %s235 = scalar_lea.vmem %s2, %s234
          %s236 = smul.u32 2, %s27
        $region32: #{tpu_custom_call.1} parent=19 // pred_fallthru
          _
      $region20: #{tpu_custom_call.1} parent=5 // pred_fallthru
        _
      %p237 = scmp.le.s32.totalorder 1, %s19
      %p238 = scmp.lt.s32.totalorder %s19, 3
      %p239 = pnand %p237, %p238
      %p240 = pneg %p239
      // Predicated region
      $region33: #{tpu_custom_call.1} parent=5 // pred_check
        _
      $region34: #{tpu_custom_call.1} parent=5 // pred_check_branch
        %242 = sbr.rel (%p239) target = $region36
      $region35: #{tpu_custom_call.1} parent=5 // pred_region
        %s243 = ssub.s32 %s19, 1
        %s244 = sand.u32 %s44, 1
        %s245 = scalar_lea.sflag [#allocation3], %s244
        %s246 = sand.u32 %s44, 1
        %s247 = smul.addr %s246, 8
        %s248 = scalar_lea.vmem [#allocation2], %s247
        // Predicated region
        $region37: #{tpu_custom_call.1} parent=35 // pred_check
          %p249 = pneg %p57
        $region38: #{tpu_custom_call.1} parent=35 // pred_check_branch
          %251 = sbr.rel (%p249) target = $region40
        $region39: #{tpu_custom_call.1} parent=35 // pred_region
          %253 = dma.done %s245, 128
        $region40: #{tpu_custom_call.1} parent=35 // pred_fallthru
          _
        %s254 = sand.u32 %s72, 1
        %s255 = scalar_lea.sflag [#allocation6], %s254
        %s256 = sand.u32 %s72, 1
        %s257 = smul.addr %s256, 16
        %s258 = scalar_lea.vmem [#allocation5], %s257
        // Predicated region
        $region41: #{tpu_custom_call.1} parent=35 // pred_check
          %p259 = pneg %p85
        $region42: #{tpu_custom_call.1} parent=35 // pred_check_branch
          %261 = sbr.rel (%p259) target = $region44
        $region43: #{tpu_custom_call.1} parent=35 // pred_region
          %263 = dma.done %s255, 256
        $region44: #{tpu_custom_call.1} parent=35 // pred_fallthru
          _
        %s264 = sand.u32 %s44, 1
        %s265 = scalar_lea.sflag [#allocation3], %s264
        %s266 = sand.u32 %s44, 1
        %s267 = smul.addr %s266, 8
        %s268 = scalar_lea.vmem [#allocation2], %s267
        %p269 = pneg %p57
        %p270 = pneg %p54
        %s271 = sand.u32 %s72, 1
        %s272 = scalar_lea.sflag [#allocation6], %s271
        %s273 = sand.u32 %s72, 1
        %s274 = smul.addr %s273, 16
        %s275 = scalar_lea.vmem [#allocation5], %s274
        %p276 = pneg %p85
        %p277 = pneg %p82
        %s278 = smul.u32 2, %s29
        %p279 = scmp.lt.s32.totalorder %s28, 1
        %s280 = scalar_select %p279, %s28, 1
        %p281 = scmp.lt.s32.totalorder %s278, 1
        %s282 = scalar_select %p281, %s278, 1
        %s283 = smul.addr %s280, 2
        %s284 = sadd.s32 %s282, %s283
        %s285 = scalar_lea.vmem %s2, %s284
        %p286 = pneg %p113
        %p287 = pneg %p110
        %p288 = pneg %p134
        %p289 = pneg %p131
        %p290 = pneg %p162
        %p291 = pneg %p159
        %s292 = sand.u32 %s149, 1
        %s293 = scalar_lea.sflag [#allocation4], %s292
        %s294 = sand.u32 %s149, 1
        %s295 = smul.addr %s294, 16
        %s296 = scalar_lea.vmem [#allocation7], %s295
        %s297 = smul.u32 2, %s29
        %s298 = smul.u32 2, %s29
        %p299 = scmp.lt.s32.totalorder %s28, 1
        %s300 = scalar_select %p299, %s28, 1
        %p301 = scmp.lt.s32.totalorder %s298, 1
        %s302 = scalar_select %p301, %s298, 1
        %s303 = smul.addr %s300, 2
        %s304 = sadd.s32 %s302, %s303
        %s305 = scalar_lea.vmem %s2, %s304
        %s306 = smul.u32 2, %s29
        %s307 = smul.u32 2, %s29
        %v308 = vld [vmem:[%s248] sm:$0xff]
        %v309 = vld [vmem:[%s258] sm:$0xff]
        %v310 = vld [vmem:[%s258 + $0x8] sm:$0xff]
        %v311 = vld [vmem:[%s305] sm:$0x3]
        %v313 = vperm.slane %v311, 0
        %v314 = vperm.slane %v311, 1
        %vm317 = vcmask 64512
        %v319 = vsel %vm317, %v308, 0
        %321 = vmatpush.msra.mxu0 0.0
        %322 = vmatpush.msra.mxu0 0.0
        %323 = vmatpush.msra.mxu0 0.0
        %324 = vmatpush.msra.mxu0 0.0
        %325 = vmatpush.msra.mxu0 0.0
        %326 = vmatpush.msra.mxu0 0.0
        %327 = vmatpush.msra.mxu0 0.0
        %328 = vmatpush.msra.mxu0 0.0
        %329 = vmatpush.msra.mxu0 0.0
        %330 = vmatpush.msra.mxu0 0.0
        %331 = vmatpush.msra.mxu0 0.0
        %332 = vmatpush.msra.mxu0 0.0
        %333 = vmatpush.msra.mxu0 0.0
        %334 = vmatpush.msra.mxu0 0.0
        %335 = vmatpush.msra.mxu0 0.0
        %336 = vmatpush.msra.mxu0 %v309
        %337 = vmatmul.f32.gmra.mxu0 %v319
        %v338 = vpop.f32.mrf.mxu0
        %v339 = vadd.f32 %v313, %v338
        %340 = vdwg.mxu0
        %341 = vmatpush.msra.mxu0 0.0
        %342 = vmatpush.msra.mxu0 0.0
        %343 = vmatpush.msra.mxu0 0.0
        %344 = vmatpush.msra.mxu0 0.0
        %345 = vmatpush.msra.mxu0 0.0
        %346 = vmatpush.msra.mxu0 0.0
        %347 = vmatpush.msra.mxu0 0.0
        %348 = vmatpush.msra.mxu0 0.0
        %349 = vmatpush.msra.mxu0 0.0
        %350 = vmatpush.msra.mxu0 0.0
        %351 = vmatpush.msra.mxu0 0.0
        %352 = vmatpush.msra.mxu0 0.0
        %353 = vmatpush.msra.mxu0 0.0
        %354 = vmatpush.msra.mxu0 0.0
        %355 = vmatpush.msra.mxu0 0.0
        %356 = vmatpush.msra.mxu0 %v310
        %357 = vmatmul.f32.gmra.mxu0 %v319
        %v358 = vpop.f32.mrf.mxu0
        %v359 = vadd.f32 %v314, %v358
        %360 = vdwg.mxu0
        %v361 = vld [vmem:[%s3] sm:$0xff]
        %363 = vset.pattern.permute.xlu0 0
        %364 = vperm.xlu0 %363, %v361
        %v365 = vpop.permute.xlu0 %364
        %v367 = vadd.f32 %v339, %v365
        %v368 = vadd.f32 %v359, %v365
        %vm369 = vcmp.ge.f32.partialorder %v367, 0.0
        %vm370 = vcmp.ge.f32.partialorder %v368, 0.0
        %v371 = vmul.f32 %v367, 0.2
        %v372 = vmul.f32 %v368, 0.2
        %v373 = vsel %vm369, %v367, %v371
        %v374 = vsel %vm370, %v368, %v372
        %v375 = vmul.f32 %v373, 1.4142135
        %v376 = vmul.f32 %v374, 1.4142135
        %v377 = vmax.f32 %v375, -256.0
        %v378 = vmax.f32 %v376, -256.0
        %v379 = vmin.f32 %v377, 256.0
        %v380 = vmin.f32 %v378, 256.0
        %381 = vst [vmem:[%s296] sm:$0xff] %v379
        %382 = vst [vmem:[%s296 + $0x8] sm:$0xff] %v380
        %s383 = sand.u32 %s149, 1
        %s384 = scalar_lea.sflag [#allocation4], %s383
        %s385 = sand.u32 %s149, 1
        %s386 = smul.addr %s385, 16
        %s387 = scalar_lea.vmem [#allocation7], %s386
        // Predicated region
        $region45: #{tpu_custom_call.1} parent=35 // pred_check
          %p388 = pneg %p159
        $region46: #{tpu_custom_call.1} parent=35 // pred_check_branch
          %390 = sbr.rel (%p388) target = $region48
        $region47: #{tpu_custom_call.1} parent=35 // pred_region
          %s391 = smul.u32 2, %s29
          %393 = vsyncadd %s384, 0
          %s394 = smul.addr %s28, 2
          %s395 = sadd.s32 %s391, %s394
          %s396 = smul.addr %s395, 8
          %s397 = scalar_lea.hbm %s4, %s396
          %s399 = sshll.u32 %s387, 4
          %s400 = int_to_ptr.vmem [resolvable:$true] %s399
          %s401 = sshll.u32 %s397, 4
          %s402 = int_to_ptr.hbm [resolvable:$true] %s401
          %404 = dma.vmem_to_hbm [thread:$0]  %s400, 256, %s402, %s384
        $region48: #{tpu_custom_call.1} parent=35 // pred_fallthru
          _
      $region36: #{tpu_custom_call.1} parent=5 // pred_fallthru
        _
      %p405 = scmp.le.s32.totalorder 2, %s19
      // Predicated region
      $region49: #{tpu_custom_call.1} parent=5 // pred_check
        %p406 = pneg %p405
      $region50: #{tpu_custom_call.1} parent=5 // pred_check_branch
        %408 = sbr.rel (%p406) target = $region52
      $region51: #{tpu_custom_call.1} parent=5 // pred_region
        %s409 = ssub.s32 %s19, 2
        // Predicated region
        $region53: #{tpu_custom_call.1} parent=51 // pred_check
          %p410 = pneg %p165
        $region54: #{tpu_custom_call.1} parent=51 // pred_check_branch
          %412 = sbr.rel (%p410) target = $region56
        $region55: #{tpu_custom_call.1} parent=51 // pred_region
          %s413 = sand.u32 %s150, 1
          %s414 = scalar_lea.sflag [#allocation4], %s413
          %s415 = sand.u32 %s150, 1
          %s416 = smul.addr %s415, 16
          %s417 = scalar_lea.vmem [#allocation7], %s416
          %419 = dma.done %s414, 256
        $region56: #{tpu_custom_call.1} parent=51 // pred_fallthru
          _
      $region52: #{tpu_custom_call.1} parent=5 // pred_fallthru
        _
    $region6: #{tpu_custom_call.1} parent=1 // loop_footer
      %s23 = sadd.s32 1, %s19
    $region7: #{tpu_custom_call.1} parent=1 // loop_footer_branch
      %18 = sbr.rel target = $region3
    $region8: #{tpu_custom_call.1} parent=1 // loop_exit
      _
    %420 = vsyncpa [#allocation3], 1
    %s421 = scalar_lea.sflag [#allocation3], 1
    %422 = vsyncpa %s421, 1
    %423 = vsyncpa [#allocation6], 1
    %s424 = scalar_lea.sflag [#allocation6], 1
    %425 = vsyncpa %s424, 1
    %426 = vsyncpa [#allocation4], 1
    %s427 = scalar_lea.sflag [#allocation4], 1
    %428 = vsyncpa %s427, 1

</llo_original>
